<compile_context>
chip_gen: v7x
topology: tpu7x:2x2x1
jax: 0.10.0
libtpu: 0.0.40
codegen_flags: <defaults>
</compile_context>

<pallas_src>
import math
from functools import partial

import jax
import jax.numpy as jnp
from jax.experimental import pallas as pl
from jax.experimental.pallas import tpu as pltpu


def _bert_attention_kernel(x_ref, mask_ref,
                           wqkv_ref, bqkv_ref,
                           wo_ref, bo_ref,
                           gamma_ref, beta_ref,
                           o_ref,
                           *, num_heads, head_size, eps):
    # x_ref:    (1, T, D)   current batch element (f32)
    # mask_ref: (1, 1, T)   additive mask for this batch element (f32)
    # wqkv_ref: (D, 3D)     fused Q/K/V weights, (in, out) layout, bf16
    # bqkv_ref: (1, 3D)     fused Q/K/V biases, f32
    # wo_ref:   (D, D)      output dense weight, (in, out) layout, bf16
    # bo_ref:   (1, D)      output dense bias, f32
    # gamma_ref/beta_ref: (1, D) LayerNorm affine params, f32
    # o_ref:    (1, T, D)
    T = x_ref.shape[1]
    D = num_heads * head_size

    x = x_ref[0]                                   # (T, D) f32
    mask = mask_ref[0]                             # (1, T) f32 additive

    # --- Fused QKV projection: one bf16 MXU matmul, f32 accumulation. ---
    xb = x.astype(jnp.bfloat16)
    qkv = jnp.dot(xb, wqkv_ref[...],
                  preferred_element_type=jnp.float32) + bqkv_ref[0]   # (T, 3D) f32

    # --- Split heads: (T, D) -> (H, T, dh) via static lane slices + stack. ---
    def split_heads(z2d):
        return jnp.stack(
            [z2d[:, h * head_size:(h + 1) * head_size] for h in range(num_heads)],
            axis=0)

    q = split_heads(qkv[:, :D]).astype(jnp.bfloat16)          # (H, T, dh)
    k = split_heads(qkv[:, D:2 * D]).astype(jnp.bfloat16)     # (H, T, dh)
    v = split_heads(qkv[:, 2 * D:]).astype(jnp.bfloat16)      # (H, T, dh)

    scale = 1.0 / math.sqrt(head_size)

    # --- Head-batched QK^T: contracts last dims directly, no .T per head. ---
    s = jnp.einsum("hqd,hkd->hqk", q, k,
                   preferred_element_type=jnp.float32) * scale        # (H, T, T) f32
    s = s + mask[None]                                                # (1,1,T) broadcast

    # --- Numerically stable softmax, all elementwise math in f32. ---
    m = jnp.max(s, axis=-1, keepdims=True)
    p = jnp.exp(s - m)
    l = jnp.sum(p, axis=-1, keepdims=True)
    p = p * pl.reciprocal(l, approx=True)          # EUP reciprocal, not a VPU divide

    # --- Head-batched P @ V. ---
    y = jnp.einsum("hqk,hkd->hqd", p.astype(jnp.bfloat16), v,
                   preferred_element_type=jnp.float32)                # (H, T, dh) f32

    # Merge heads back to a lane-dense (T, D) slab.
    attn = jnp.concatenate([y[h] for h in range(num_heads)], axis=-1)  # (T, D) f32

    # --- BertSelfOutput: dense + (dropout=0) + residual + LayerNorm. ---
    out = jnp.dot(attn.astype(jnp.bfloat16), wo_ref[...],
                  preferred_element_type=jnp.float32) + bo_ref[0]      # (T, D) f32
    h = out + x
    mu = jnp.mean(h, axis=-1, keepdims=True)
    var = jnp.mean(jnp.square(h - mu), axis=-1, keepdims=True)
    hn = (h - mu) * jax.lax.rsqrt(var + eps)
    o = hn * gamma_ref[0] + beta_ref[0]

    # Single full-width lane-dense store.
    o_ref[0] = o.astype(o_ref.dtype)


def bert_attention(hidden_states, attention_mask, params, num_heads,
                   eps=1e-12):
    """hidden_states: (B, T, D) f32; attention_mask: (B, T) f32 additive mask."""
    B, T, D = hidden_states.shape
    assert D % num_heads == 0
    head_size = D // num_heads

    # PyTorch nn.Linear stores weight as (out, in); pass it as (in, out).
    # Fuse Q/K/V weights into one (D, 3D) matrix and biases into (1, 3D).
    # Weights are kept in bf16 (halves weight DMA/VMEM; f32 accumulation on MXU).
    wqkv = jnp.concatenate(
        [params["wq"].T, params["wk"].T, params["wv"].T], axis=1).astype(jnp.bfloat16)
    bqkv = jnp.concatenate(
        [params["bq"], params["bk"], params["bv"]]).reshape(1, 3 * D).astype(jnp.float32)
    wo = params["wo"].T.astype(jnp.bfloat16)
    bo = params["bo"].reshape(1, D).astype(jnp.float32)
    gamma = params["ln_gamma"].reshape(1, D).astype(jnp.float32)
    beta = params["ln_beta"].reshape(1, D).astype(jnp.float32)
    mask3 = attention_mask.reshape(B, 1, T).astype(jnp.float32)

    kernel = partial(_bert_attention_kernel,
                     num_heads=num_heads, head_size=head_size, eps=eps)

    # Constant-block specs (weights never change across the grid).
    def const_spec(shape):
        return pl.BlockSpec(shape, lambda b: (0,) * len(shape))

    out = pl.pallas_call(
        kernel,
        out_shape=jax.ShapeDtypeStruct((B, T, D), hidden_states.dtype),
        grid_spec=pltpu.PrefetchScalarGridSpec(
            num_scalar_prefetch=0,
            grid=(B,),
            in_specs=[
                pl.BlockSpec((1, T, D), lambda b: (b, 0, 0)),   # hidden_states
                pl.BlockSpec((1, 1, T), lambda b: (b, 0, 0)),   # additive mask
                const_spec((D, 3 * D)),                         # W_qkv (bf16)
                const_spec((1, 3 * D)),                         # b_qkv
                const_spec((D, D)),                             # W_o (bf16)
                const_spec((1, D)),                             # b_o
                const_spec((1, D)),                             # LN gamma
                const_spec((1, D)),                             # LN beta
            ],
            out_specs=pl.BlockSpec((1, T, D), lambda b: (b, 0, 0)),
        ),
        compiler_params=pltpu.CompilerParams(
            dimension_semantics=("parallel",),        # megacore: split B across cores
            # Raised above the 16/32 MiB scoped defaults; still leaves headroom
            # under v7x's 64 MiB physical VMEM.
            vmem_limit_bytes=48 * 1024 * 1024),
    )(hidden_states, mask3, wqkv, bqkv, wo, bo, gamma, beta)
    return out


def _reference(hidden_states, attention_mask, params, num_heads, eps=1e-12):
    """Pure-JAX reference mirroring the PyTorch BertAttention forward (eval mode)."""
    B, T, D = hidden_states.shape
    dh = D // num_heads

    def proj(x, w, b):
        return x @ w.T + b

    q = proj(hidden_states, params["wq"], params["bq"]).reshape(B, T, num_heads, dh).transpose(0, 2, 1, 3)
    k = proj(hidden_states, params["wk"], params["bk"]).reshape(B, T, num_heads, dh).transpose(0, 2, 1, 3)
    v = proj(hidden_states, params["wv"], params["bv"]).reshape(B, T, num_heads, dh).transpose(0, 2, 1, 3)

    s = jnp.einsum("bhtd,bhsd->bhts", q, k) / math.sqrt(dh)
    s = s + attention_mask[:, None, None, :]
    p = jax.nn.softmax(s, axis=-1)
    y = jnp.einsum("bhts,bhsd->bhtd", p, v)
    y = y.transpose(0, 2, 1, 3).reshape(B, T, D)

    out = y @ params["wo"].T + params["bo"]
    h = out + hidden_states
    mu = h.mean(-1, keepdims=True)
    var = ((h - mu) ** 2).mean(-1, keepdims=True)
    return (h - mu) / jnp.sqrt(var + eps) * params["ln_gamma"] + params["ln_beta"]


if __name__ == "__main__":
    # Small BertConfig-like setup: hidden=32, heads=4, seq=8, batch=2.
    B, T, D, H = 2, 8, 32, 4

    key = jax.random.PRNGKey(0)
    ks = jax.random.split(key, 12)
    hidden_states = jax.random.normal(ks[0], (B, T, D), dtype=jnp.float32)

    # Additive BERT-style mask: 0 for attended positions, -1e9 for padded.
    pad = jax.random.bernoulli(ks[1], 0.25, (B, T))
    attention_mask = jnp.where(pad, -1e9, 0.0).astype(jnp.float32)
    attention_mask = attention_mask.at[:, 0].set(0.0)   # first token always attendable

    scale = 0.02
    params = {
        "wq": scale * jax.random.normal(ks[2], (D, D), dtype=jnp.float32),
        "bq": scale * jax.random.normal(ks[3], (D,), dtype=jnp.float32),
        "wk": scale * jax.random.normal(ks[4], (D, D), dtype=jnp.float32),
        "bk": scale * jax.random.normal(ks[5], (D,), dtype=jnp.float32),
        "wv": scale * jax.random.normal(ks[6], (D, D), dtype=jnp.float32),
        "bv": scale * jax.random.normal(ks[7], (D,), dtype=jnp.float32),
        "wo": scale * jax.random.normal(ks[8], (D, D), dtype=jnp.float32),
        "bo": scale * jax.random.normal(ks[9], (D,), dtype=jnp.float32),
        "ln_gamma": 1.0 + scale * jax.random.normal(ks[10], (D,), dtype=jnp.float32),
        "ln_beta": scale * jax.random.normal(ks[11], (D,), dtype=jnp.float32),
    }

    out = bert_attention(hidden_states, attention_mask, params, num_heads=H)
    out = jax.block_until_ready(out)

    ref = _reference(hidden_states, attention_mask, params, num_heads=H)
    assert out.shape == (B, T, D)
    err = jnp.max(jnp.abs(out - ref))
    # bf16 MXU operands (f32 accumulation) + approx softmax reciprocal -> loose tol.
    assert jnp.allclose(out, ref, atol=2e-2, rtol=2e-2), f"max abs err = {err}"

    print("KERNEL_OK")
</pallas_src>

<mosaic_0001>
module attributes {stable_mosaic.version = 11 : i64} {
  func.func @_bert_attention_kernel(%arg0: i32, %arg1: memref<1x8x32xf32, #tpu.memory_space<vmem>>, %arg2: memref<1x1x8xf32, #tpu.memory_space<vmem>>, %arg3: memref<32x96xbf16, #tpu.memory_space<vmem>>, %arg4: memref<1x96xf32, #tpu.memory_space<vmem>>, %arg5: memref<32x32xbf16, #tpu.memory_space<vmem>>, %arg6: memref<1x32xf32, #tpu.memory_space<vmem>>, %arg7: memref<1x32xf32, #tpu.memory_space<vmem>>, %arg8: memref<1x32xf32, #tpu.memory_space<vmem>>, %arg9: memref<1x8x32xf32, #tpu.memory_space<vmem>>) attributes {dimension_semantics = [#tpu.dimension_semantics<parallel>], iteration_bounds = array<i64: 2>, scalar_prefetch = 0 : i64, scratch_operands = 0 : i64, tpu.core_type = #tpu.core_type<tc>, window_params = [{transform_indices = @transform_0, window_bounds = array<i64: 1, 8, 32>}, {transform_indices = @transform_1, window_bounds = array<i64: 1, 1, 8>}, {pipeline_mode = #tpu.pipeline_mode<synchronous>, transform_indices = @transform_2, window_bounds = array<i64: 32, 96>}, {pipeline_mode = #tpu.pipeline_mode<synchronous>, transform_indices = @transform_3, window_bounds = array<i64: 1, 96>}, {pipeline_mode = #tpu.pipeline_mode<synchronous>, transform_indices = @transform_4, window_bounds = array<i64: 32, 32>}, {pipeline_mode = #tpu.pipeline_mode<synchronous>, transform_indices = @transform_5, window_bounds = array<i64: 1, 32>}, {pipeline_mode = #tpu.pipeline_mode<synchronous>, transform_indices = @transform_6, window_bounds = array<i64: 1, 32>}, {pipeline_mode = #tpu.pipeline_mode<synchronous>, transform_indices = @transform_7, window_bounds = array<i64: 1, 32>}, {transform_indices = @transform_8, window_bounds = array<i64: 1, 8, 32>}]} {
    %c0 = arith.constant 0 : index
    %c0_0 = arith.constant 0 : index
    %c0_1 = arith.constant 0 : index
    %0 = vector.load %arg1[%c0, %c0_0, %c0_1] : memref<1x8x32xf32, #tpu.memory_space<vmem>>, vector<1x8x32xf32>
    %1 = vector.shape_cast %0 : vector<1x8x32xf32> to vector<8x32xf32>
    %c0_2 = arith.constant 0 : index
    %c0_3 = arith.constant 0 : index
    %c0_4 = arith.constant 0 : index
    %2 = vector.load %arg2[%c0_2, %c0_3, %c0_4] : memref<1x1x8xf32, #tpu.memory_space<vmem>>, vector<1x1x8xf32>
    %3 = vector.shape_cast %2 : vector<1x1x8xf32> to vector<1x8xf32>
    %4 = arith.truncf %1 : vector<8x32xf32> to vector<8x32xbf16>
    %c0_5 = arith.constant 0 : index
    %c0_6 = arith.constant 0 : index
    %5 = vector.load %arg3[%c0_5, %c0_6] : memref<32x96xbf16, #tpu.memory_space<vmem>>, vector<32x96xbf16>
    %cst = arith.constant dense<0.000000e+00> : vector<8x96xf32>
    %6 = tpu.matmul %4, %5, %cst {dimension_numbers = #tpu.dot_dimension_numbers<[1], [0], [0], [1], [0, 0, 1, 1], [], []>} : vector<8x32xbf16>, vector<32x96xbf16>, vector<8x96xf32> -> vector<8x96xf32>
    %c0_7 = arith.constant 0 : index
    %c0_8 = arith.constant 0 : index
    %7 = vector.load %arg4[%c0_7, %c0_8] : memref<1x96xf32, #tpu.memory_space<vmem>>, vector<1x96xf32>
    %8 = vector.shape_cast %7 : vector<1x96xf32> to vector<96xf32>
    %9 = vector.shape_cast %8 : vector<96xf32> to vector<1x96xf32>
    %10 = vector.broadcast %9 : vector<1x96xf32> to vector<8x96xf32>
    %11 = arith.addf %6, %10 : vector<8x96xf32>
    %12 = vector.extract_strided_slice %11 {offsets = [0, 0], sizes = [8, 32], strides = [1, 1]} : vector<8x96xf32> to vector<8x32xf32>
    %13 = vector.extract_strided_slice %12 {offsets = [0, 0], sizes = [8, 8], strides = [1, 1]} : vector<8x32xf32> to vector<8x8xf32>
    %14 = vector.extract_strided_slice %12 {offsets = [0, 8], sizes = [8, 8], strides = [1, 1]} : vector<8x32xf32> to vector<8x8xf32>
    %15 = vector.extract_strided_slice %12 {offsets = [0, 16], sizes = [8, 8], strides = [1, 1]} : vector<8x32xf32> to vector<8x8xf32>
    %16 = vector.extract_strided_slice %12 {offsets = [0, 24], sizes = [8, 8], strides = [1, 1]} : vector<8x32xf32> to vector<8x8xf32>
    %17 = vector.shape_cast %13 : vector<8x8xf32> to vector<1x8x8xf32>
    %18 = vector.shape_cast %14 : vector<8x8xf32> to vector<1x8x8xf32>
    %19 = vector.shape_cast %15 : vector<8x8xf32> to vector<1x8x8xf32>
    %20 = vector.shape_cast %16 : vector<8x8xf32> to vector<1x8x8xf32>
    %21 = tpu.concatenate %17, %18, %19, %20 in 0 : vector<1x8x8xf32>, vector<1x8x8xf32>, vector<1x8x8xf32>, vector<1x8x8xf32> -> vector<4x8x8xf32>
    %22 = arith.truncf %21 : vector<4x8x8xf32> to vector<4x8x8xbf16>
    %23 = vector.extract_strided_slice %11 {offsets = [0, 32], sizes = [8, 32], strides = [1, 1]} : vector<8x96xf32> to vector<8x32xf32>
    %24 = vector.extract_strided_slice %23 {offsets = [0, 0], sizes = [8, 8], strides = [1, 1]} : vector<8x32xf32> to vector<8x8xf32>
    %25 = vector.extract_strided_slice %23 {offsets = [0, 8], sizes = [8, 8], strides = [1, 1]} : vector<8x32xf32> to vector<8x8xf32>
    %26 = vector.extract_strided_slice %23 {offsets = [0, 16], sizes = [8, 8], strides = [1, 1]} : vector<8x32xf32> to vector<8x8xf32>
    %27 = vector.extract_strided_slice %23 {offsets = [0, 24], sizes = [8, 8], strides = [1, 1]} : vector<8x32xf32> to vector<8x8xf32>
    %28 = vector.shape_cast %24 : vector<8x8xf32> to vector<1x8x8xf32>
    %29 = vector.shape_cast %25 : vector<8x8xf32> to vector<1x8x8xf32>
    %30 = vector.shape_cast %26 : vector<8x8xf32> to vector<1x8x8xf32>
    %31 = vector.shape_cast %27 : vector<8x8xf32> to vector<1x8x8xf32>
    %32 = tpu.concatenate %28, %29, %30, %31 in 0 : vector<1x8x8xf32>, vector<1x8x8xf32>, vector<1x8x8xf32>, vector<1x8x8xf32> -> vector<4x8x8xf32>
    %33 = arith.truncf %32 : vector<4x8x8xf32> to vector<4x8x8xbf16>
    %34 = vector.extract_strided_slice %11 {offsets = [0, 64], sizes = [8, 32], strides = [1, 1]} : vector<8x96xf32> to vector<8x32xf32>
    %35 = vector.extract_strided_slice %34 {offsets = [0, 0], sizes = [8, 8], strides = [1, 1]} : vector<8x32xf32> to vector<8x8xf32>
    %36 = vector.extract_strided_slice %34 {offsets = [0, 8], sizes = [8, 8], strides = [1, 1]} : vector<8x32xf32> to vector<8x8xf32>
    %37 = vector.extract_strided_slice %34 {offsets = [0, 16], sizes = [8, 8], strides = [1, 1]} : vector<8x32xf32> to vector<8x8xf32>
    %38 = vector.extract_strided_slice %34 {offsets = [0, 24], sizes = [8, 8], strides = [1, 1]} : vector<8x32xf32> to vector<8x8xf32>
    %39 = vector.shape_cast %35 : vector<8x8xf32> to vector<1x8x8xf32>
    %40 = vector.shape_cast %36 : vector<8x8xf32> to vector<1x8x8xf32>
    %41 = vector.shape_cast %37 : vector<8x8xf32> to vector<1x8x8xf32>
    %42 = vector.shape_cast %38 : vector<8x8xf32> to vector<1x8x8xf32>
    %43 = tpu.concatenate %39, %40, %41, %42 in 0 : vector<1x8x8xf32>, vector<1x8x8xf32>, vector<1x8x8xf32>, vector<1x8x8xf32> -> vector<4x8x8xf32>
    %44 = arith.truncf %43 : vector<4x8x8xf32> to vector<4x8x8xbf16>
    "tpu.trace_start"() <{level = 10 : i32, message = "hqd,hkd->hqk"}> : () -> ()
    %cst_9 = arith.constant dense<0.000000e+00> : vector<4x8x8xf32>
    %45 = tpu.matmul %22, %33, %cst_9 {dimension_numbers = #tpu.dot_dimension_numbers<[2], [2], [1], [1], [0, 0, 0, 1, 1, 1], [0], [0]>} : vector<4x8x8xbf16>, vector<4x8x8xbf16>, vector<4x8x8xf32> -> vector<4x8x8xf32>
    "tpu.trace_stop"() : () -> ()
    %cst_10 = arith.constant 0.353553385 : f32
    %46 = vector.broadcast %cst_10 : f32 to vector<4x8x8xf32>
    %47 = arith.mulf %45, %46 : vector<4x8x8xf32>
    %48 = vector.shape_cast %3 : vector<1x8xf32> to vector<1x1x8xf32>
    %49 = vector.broadcast %48 : vector<1x1x8xf32> to vector<4x8x8xf32>
    %50 = arith.addf %47, %49 : vector<4x8x8xf32>
    %cst_11 = arith.constant dense<0xFF800000> : vector<4x8xf32>
    %51 = vector.multi_reduction <maximumf>, %50, %cst_11 [2] : vector<4x8x8xf32> to vector<4x8xf32>
    %52 = vector.shape_cast %51 : vector<4x8xf32> to vector<4x8x1xf32>
    %53 = vector.broadcast %52 : vector<4x8x1xf32> to vector<4x8x8xf32>
    %54 = arith.subf %50, %53 : vector<4x8x8xf32>
    %55 = math.exp %54 : vector<4x8x8xf32>
    %cst_12 = arith.constant dense<0.000000e+00> : vector<4x8xf32>
    %56 = vector.multi_reduction <add>, %55, %cst_12 [2] : vector<4x8x8xf32> to vector<4x8xf32>
    %57 = vector.shape_cast %56 : vector<4x8xf32> to vector<4x8x1xf32>
    %58 = tpu.reciprocal %57 {approx = true} : vector<4x8x1xf32> -> vector<4x8x1xf32>
    %59 = vector.broadcast %58 : vector<4x8x1xf32> to vector<4x8x8xf32>
    %60 = arith.mulf %55, %59 : vector<4x8x8xf32>
    %61 = arith.truncf %60 : vector<4x8x8xf32> to vector<4x8x8xbf16>
    "tpu.trace_start"() <{level = 10 : i32, message = "hqk,hkd->hqd"}> : () -> ()
    %cst_13 = arith.constant dense<0.000000e+00> : vector<4x8x8xf32>
    %62 = tpu.matmul %61, %44, %cst_13 {dimension_numbers = #tpu.dot_dimension_numbers<[2], [1], [1], [2], [0, 0, 0, 1, 1, 2], [0], [0]>} : vector<4x8x8xbf16>, vector<4x8x8xbf16>, vector<4x8x8xf32> -> vector<4x8x8xf32>
    "tpu.trace_stop"() : () -> ()
    %63 = vector.extract_strided_slice %62 {offsets = [0, 0, 0], sizes = [1, 8, 8], strides = [1, 1, 1]} : vector<4x8x8xf32> to vector<1x8x8xf32>
    %64 = vector.shape_cast %63 : vector<1x8x8xf32> to vector<8x8xf32>
    %65 = vector.extract_strided_slice %62 {offsets = [1, 0, 0], sizes = [1, 8, 8], strides = [1, 1, 1]} : vector<4x8x8xf32> to vector<1x8x8xf32>
    %66 = vector.shape_cast %65 : vector<1x8x8xf32> to vector<8x8xf32>
    %67 = vector.extract_strided_slice %62 {offsets = [2, 0, 0], sizes = [1, 8, 8], strides = [1, 1, 1]} : vector<4x8x8xf32> to vector<1x8x8xf32>
    %68 = vector.shape_cast %67 : vector<1x8x8xf32> to vector<8x8xf32>
    %69 = vector.extract_strided_slice %62 {offsets = [3, 0, 0], sizes = [1, 8, 8], strides = [1, 1, 1]} : vector<4x8x8xf32> to vector<1x8x8xf32>
    %70 = vector.shape_cast %69 : vector<1x8x8xf32> to vector<8x8xf32>
    %71 = tpu.concatenate %64, %66, %68, %70 in 1 : vector<8x8xf32>, vector<8x8xf32>, vector<8x8xf32>, vector<8x8xf32> -> vector<8x32xf32>
    %72 = arith.truncf %71 : vector<8x32xf32> to vector<8x32xbf16>
    %c0_14 = arith.constant 0 : index
    %c0_15 = arith.constant 0 : index
    %73 = vector.load %arg5[%c0_14, %c0_15] : memref<32x32xbf16, #tpu.memory_space<vmem>>, vector<32x32xbf16>
    %cst_16 = arith.constant dense<0.000000e+00> : vector<8x32xf32>
    %74 = tpu.matmul %72, %73, %cst_16 {dimension_numbers = #tpu.dot_dimension_numbers<[1], [0], [0], [1], [0, 0, 1, 1], [], []>} : vector<8x32xbf16>, vector<32x32xbf16>, vector<8x32xf32> -> vector<8x32xf32>
    %c0_17 = arith.constant 0 : index
    %c0_18 = arith.constant 0 : index
    %75 = vector.load %arg6[%c0_17, %c0_18] : memref<1x32xf32, #tpu.memory_space<vmem>>, vector<1x32xf32>
    %76 = vector.shape_cast %75 : vector<1x32xf32> to vector<32xf32>
    %77 = vector.shape_cast %76 : vector<32xf32> to vector<1x32xf32>
    %78 = vector.broadcast %77 : vector<1x32xf32> to vector<8x32xf32>
    %79 = arith.addf %74, %78 : vector<8x32xf32>
    %80 = arith.addf %79, %1 : vector<8x32xf32>
    %cst_19 = arith.constant dense<0.000000e+00> : vector<8xf32>
    %81 = vector.multi_reduction <add>, %80, %cst_19 [1] : vector<8x32xf32> to vector<8xf32>
    %82 = vector.shape_cast %81 : vector<8xf32> to vector<8x1xf32>
    %cst_20 = arith.constant 3.200000e+01 : f32
    %83 = vector.broadcast %cst_20 : f32 to vector<8x1xf32>
    %84 = arith.divf %82, %83 : vector<8x1xf32>
    %85 = vector.broadcast %84 : vector<8x1xf32> to vector<8x32xf32>
    %86 = arith.subf %80, %85 : vector<8x32xf32>
    %87 = arith.mulf %86, %86 : vector<8x32xf32>
    %cst_21 = arith.constant dense<0.000000e+00> : vector<8xf32>
    %88 = vector.multi_reduction <add>, %87, %cst_21 [1] : vector<8x32xf32> to vector<8xf32>
    %89 = vector.shape_cast %88 : vector<8xf32> to vector<8x1xf32>
    %cst_22 = arith.constant 3.200000e+01 : f32
    %90 = vector.broadcast %cst_22 : f32 to vector<8x1xf32>
    %91 = arith.divf %89, %90 : vector<8x1xf32>
    %92 = vector.broadcast %84 : vector<8x1xf32> to vector<8x32xf32>
    %93 = arith.subf %80, %92 : vector<8x32xf32>
    %cst_23 = arith.constant 9.99999996E-13 : f32
    %94 = vector.broadcast %cst_23 : f32 to vector<8x1xf32>
    %95 = arith.addf %91, %94 : vector<8x1xf32>
    %96 = math.rsqrt %95 : vector<8x1xf32>
    %97 = vector.broadcast %96 : vector<8x1xf32> to vector<8x32xf32>
    %98 = arith.mulf %93, %97 : vector<8x32xf32>
    %c0_24 = arith.constant 0 : index
    %c0_25 = arith.constant 0 : index
    %99 = vector.load %arg7[%c0_24, %c0_25] : memref<1x32xf32, #tpu.memory_space<vmem>>, vector<1x32xf32>
    %100 = vector.shape_cast %99 : vector<1x32xf32> to vector<32xf32>
    %101 = vector.shape_cast %100 : vector<32xf32> to vector<1x32xf32>
    %102 = vector.broadcast %101 : vector<1x32xf32> to vector<8x32xf32>
    %103 = arith.mulf %98, %102 : vector<8x32xf32>
    %c0_26 = arith.constant 0 : index
    %c0_27 = arith.constant 0 : index
    %104 = vector.load %arg8[%c0_26, %c0_27] : memref<1x32xf32, #tpu.memory_space<vmem>>, vector<1x32xf32>
    %105 = vector.shape_cast %104 : vector<1x32xf32> to vector<32xf32>
    %106 = vector.shape_cast %105 : vector<32xf32> to vector<1x32xf32>
    %107 = vector.broadcast %106 : vector<1x32xf32> to vector<8x32xf32>
    %108 = arith.addf %103, %107 : vector<8x32xf32>
    %c0_28 = arith.constant 0 : index
    %c0_29 = arith.constant 0 : index
    %c0_30 = arith.constant 0 : index
    %109 = vector.load %arg9[%c0_28, %c0_29, %c0_30] : memref<1x8x32xf32, #tpu.memory_space<vmem>>, vector<1x8x32xf32>
    %110 = vector.shape_cast %109 : vector<1x8x32xf32> to vector<8x32xf32>
    %111 = vector.shape_cast %108 : vector<8x32xf32> to vector<1x8x32xf32>
    tpu.vector_store %arg9[%c0_28, %c0_29, %c0_30], %111 {strides = array<i32>} : memref<1x8x32xf32, #tpu.memory_space<vmem>>, vector<1x8x32xf32>,
    return
  }
  func.func @transform_0(%arg0: i32) -> (i32, i32, i32) {
    %c0_i32 = arith.constant 0 : i32
    %c0_i32_0 = arith.constant 0 : i32
    %c0_i32_1 = arith.constant 0 : i32
    return %arg0, %c0_i32, %c0_i32_0 : i32, i32, i32
  }
  func.func @transform_1(%arg0: i32) -> (i32, i32, i32) {
    %c0_i32 = arith.constant 0 : i32
    %c0_i32_0 = arith.constant 0 : i32
    %c0_i32_1 = arith.constant 0 : i32
    return %arg0, %c0_i32, %c0_i32_0 : i32, i32, i32
  }
  func.func @transform_2(%arg0: i32) -> (i32, i32) {
    %c0_i32 = arith.constant 0 : i32
    %c0_i32_0 = arith.constant 0 : i32
    %c0_i32_1 = arith.constant 0 : i32
    return %c0_i32, %c0_i32_0 : i32, i32
  }
  func.func @transform_3(%arg0: i32) -> (i32, i32) {
    %c0_i32 = arith.constant 0 : i32
    %c0_i32_0 = arith.constant 0 : i32
    %c0_i32_1 = arith.constant 0 : i32
    return %c0_i32, %c0_i32_0 : i32, i32
  }
  func.func @transform_4(%arg0: i32) -> (i32, i32) {
    %c0_i32 = arith.constant 0 : i32
    %c0_i32_0 = arith.constant 0 : i32
    %c0_i32_1 = arith.constant 0 : i32
    return %c0_i32, %c0_i32_0 : i32, i32
  }
  func.func @transform_5(%arg0: i32) -> (i32, i32) {
    %c0_i32 = arith.constant 0 : i32
    %c0_i32_0 = arith.constant 0 : i32
    %c0_i32_1 = arith.constant 0 : i32
    return %c0_i32, %c0_i32_0 : i32, i32
  }
  func.func @transform_6(%arg0: i32) -> (i32, i32) {
    %c0_i32 = arith.constant 0 : i32
    %c0_i32_0 = arith.constant 0 : i32
    %c0_i32_1 = arith.constant 0 : i32
    return %c0_i32, %c0_i32_0 : i32, i32
  }
  func.func @transform_7(%arg0: i32) -> (i32, i32) {
    %c0_i32 = arith.constant 0 : i32
    %c0_i32_0 = arith.constant 0 : i32
    %c0_i32_1 = arith.constant 0 : i32
    return %c0_i32, %c0_i32_0 : i32, i32
  }
  func.func @transform_8(%arg0: i32) -> (i32, i32, i32) {
    %c0_i32 = arith.constant 0 : i32
    %c0_i32_0 = arith.constant 0 : i32
    %c0_i32_1 = arith.constant 0 : i32
    return %arg0, %c0_i32, %c0_i32_0 : i32, i32, i32
  }
}

</mosaic_0001>

<llo_original>
// kernel: tpu_custom_call.1
$region0: #{tpu_custom_call.1}
  #allocation0 [shape = 'u32[]', space=smem, size = 0x4, offset = 0x4, fixed_abs, tag = 'smem constant byte address 0x4 - core index']
  #allocation1 [shape = 'u32[144,128]{1,0:T(1,128)}', space=vmem, size = 0x12000, scoped, tag = 'internal scratch']
  %s0 = inlined_call_operand.hbm [shape: f32[2,8,32], index: 0, kind: input, shape index: {}]
  %s1 = inlined_call_operand.vmem [shape: f32[2,1,8], index: 1, kind: input, shape index: {}]
  %s2 = inlined_call_operand.hbm [shape: bf16[32,96], index: 2, kind: input, shape index: {}]
  %s3 = inlined_call_operand.vmem [shape: f32[1,96], index: 3, kind: input, shape index: {}]
  %s4 = inlined_call_operand.hbm [shape: bf16[32,32], index: 4, kind: input, shape index: {}]
  %s5 = inlined_call_operand.vmem [shape: f32[1,32], index: 5, kind: input, shape index: {}]
  %s6 = inlined_call_operand.vmem [shape: f32[1,32], index: 6, kind: input, shape index: {}]
  %s7 = inlined_call_operand.vmem [shape: f32[1,32], index: 7, kind: input, shape index: {}]
  %s8 = inlined_call_operand.hbm [shape: f32[2,8,32], index: 8, kind: output, shape index: {}]
  %s9 = sld [smem:[#allocation0]]
  $region77: #{tpu_custom_call.1} parent=0
    _
  %s11 = ssub.s32 1, %s9
  %s12 = scalar_select 0, %s11, %s9
  $region1: #{tpu_custom_call.1} parent=0
    #allocation2 [shape = 'u8[8192]{0}', space=vmem, size = 0x2000, scoped, tag = 'input window, operand 0']
    #allocation3 [shape = 's32[2]{0}', space=sflag, size = 0x8, scoped, tag = 'scoped memory for tpu_custom_call.1']
    #allocation4 [shape = 's32[2]{0}', space=sflag, size = 0x8, scoped, tag = 'scoped memory for tpu_custom_call.1']
    #allocation5 [shape = 'u8[8192]{0}', space=vmem, size = 0x2000, scoped, tag = 'input window, operand 2, single buffered']
    #allocation6 [shape = 's32[1]{0}', space=sflag, size = 0x4, scoped, tag = 'scoped memory for tpu_custom_call.1']
    #allocation7 [shape = 'u8[8192]{0}', space=vmem, size = 0x2000, scoped, tag = 'input window, operand 4, single buffered']
    #allocation8 [shape = 'u8[8192]{0}', space=vmem, size = 0x2000, scoped, tag = 'output window, operand 0']
    %13 = vsyncpa [#allocation3], 0
    %s14 = scalar_lea.sflag [#allocation3], 1
    %15 = vsyncpa %s14, 0
    %16 = vsyncpa [#allocation6], 0
    %17 = vsyncpa [#allocation4], 0
    %s18 = scalar_lea.sflag [#allocation4], 1
    %19 = vsyncpa %s18, 0
    loop: start=0, step=1, limit=4
    $region2: #{tpu_custom_call.1} parent=1 // loop_pre_header
      _
    $region3: #{tpu_custom_call.1} parent=1 // loop_header
      %s21 = sphi 0, %s25
      %p22 = scmp.ge.s32.totalorder %s21, 4
      %s31 = sphi 0, %s33
      %s34 = sphi 0, %s31
      %s35 = sphi 0, %s34
      %s51 = sphi 0, %s35
      %s57 = sphi 0, %s59
      %s60 = sphi 0, %s57
      %s61 = sphi 0, %s60
      %s77 = sphi 0, %s61
      %s81 = sphi 0, %s81
      %s83 = sphi 0, %s81
      %s84 = sphi 0, %s83
      %s98 = sphi 0, %s84
      %s102 = sphi 0, %s102
      %s104 = sphi 0, %s102
      %s105 = sphi 0, %s104
      %s119 = sphi 0, %s105
      %s123 = sphi 0, %s123
      %s125 = sphi 0, %s123
      %s126 = sphi 0, %s125
      %s140 = sphi 0, %s126
      %s144 = sphi 0, %s144
      %s146 = sphi 0, %s144
      %s147 = sphi 0, %s146
      %s161 = sphi 0, %s147
      %s165 = sphi 0, %s165
      %s167 = sphi 0, %s165
      %s168 = sphi 0, %s167
      %s182 = sphi 0, %s168
      %s186 = sphi 0, %s186
      %s188 = sphi 0, %s186
      %s189 = sphi 0, %s188
      %s203 = sphi 0, %s189
      %s209 = sphi 0, %s211
      %s212 = sphi 0, %s209
      %s213 = sphi 0, %s212
      %s229 = sphi 0, %s213
    $region4: #{tpu_custom_call.1} parent=1 // loop_header_branch
      %24 = sbr.rel (%p22) target = $region8
    $region5: #{tpu_custom_call.1} parent=1 // loop_body
      %s26 = ssub.s32 %s21, 1
      %s27 = ssub.s32 %s21, 2
      %s28 = sadd.s32 %s21, 1
      %s29 = ssub.s32 %s21, %s28
      %p30 = scmp.eq.s32.totalorder %s29, 0
      %s32 = sadd.s32 %s31, 1
      %s33 = scalar_select %p30, %s31, %s32
      %p36 = pneg %p30
      %p37 = scmp.eq.s32.totalorder %s21, 1
      %p38 = por %p36, %p37
      %p39 = scmp.ne.s32.totalorder %s31, %s34
      %p40 = scmp.eq.s32.totalorder %s21, 0
      %p41 = por %p39, %p40
      %p42 = scmp.ne.s32.totalorder %s31, %s34
      %p43 = scmp.eq.s32.totalorder %s26, 1
      %p44 = por %p42, %p43
      %p45 = scmp.ne.s32.totalorder %s34, %s35
      %p46 = scmp.eq.s32.totalorder %s26, 0
      %p47 = por %p45, %p46
      %p48 = scmp.ne.s32.totalorder %s34, %s35
      %p49 = scmp.eq.s32.totalorder %s27, 1
      %p50 = por %p48, %p49
      %p52 = scmp.ne.s32.totalorder %s35, %s51
      %p53 = scmp.eq.s32.totalorder %s27, 0
      %p54 = por %p52, %p53
      %s55 = ssub.s32 %s21, %s28
      %p56 = scmp.eq.s32.totalorder %s55, 0
      %s58 = sadd.s32 %s57, 1
      %s59 = scalar_select %p56, %s57, %s58
      %p62 = pneg %p56
      %p63 = scmp.eq.s32.totalorder %s21, 1
      %p64 = por %p62, %p63
      %p65 = scmp.ne.s32.totalorder %s57, %s60
      %p66 = scmp.eq.s32.totalorder %s21, 0
      %p67 = por %p65, %p66
      %p68 = scmp.ne.s32.totalorder %s57, %s60
      %p69 = scmp.eq.s32.totalorder %s26, 1
      %p70 = por %p68, %p69
      %p71 = scmp.ne.s32.totalorder %s60, %s61
      %p72 = scmp.eq.s32.totalorder %s26, 0
      %p73 = por %p71, %p72
      %p74 = scmp.ne.s32.totalorder %s60, %s61
      %p75 = scmp.eq.s32.totalorder %s27, 1
      %p76 = por %p74, %p75
      %p78 = scmp.ne.s32.totalorder %s61, %s77
      %p79 = scmp.eq.s32.totalorder %s27, 0
      %p80 = por %p78, %p79
      %s82 = sadd.s32 %s81, 1
      %p85 = scmp.eq.s32.totalorder %s21, 1
      %p86 = scmp.ne.s32.totalorder %s81, %s83
      %p87 = scmp.eq.s32.totalorder %s21, 0
      %p88 = por %p86, %p87
      %p89 = scmp.ne.s32.totalorder %s81, %s83
      %p90 = scmp.eq.s32.totalorder %s26, 1
      %p91 = por %p89, %p90
      %p92 = scmp.ne.s32.totalorder %s83, %s84
      %p93 = scmp.eq.s32.totalorder %s26, 0
      %p94 = por %p92, %p93
      %p95 = scmp.ne.s32.totalorder %s83, %s84
      %p96 = scmp.eq.s32.totalorder %s27, 1
      %p97 = por %p95, %p96
      %p99 = scmp.ne.s32.totalorder %s84, %s98
      %p100 = scmp.eq.s32.totalorder %s27, 0
      %p101 = por %p99, %p100
      %s103 = sadd.s32 %s102, 1
      %p106 = scmp.eq.s32.totalorder %s21, 1
      %p107 = scmp.ne.s32.totalorder %s102, %s104
      %p108 = scmp.eq.s32.totalorder %s21, 0
      %p109 = por %p107, %p108
      %p110 = scmp.ne.s32.totalorder %s102, %s104
      %p111 = scmp.eq.s32.totalorder %s26, 1
      %p112 = por %p110, %p111
      %p113 = scmp.ne.s32.totalorder %s104, %s105
      %p114 = scmp.eq.s32.totalorder %s26, 0
      %p115 = por %p113, %p114
      %p116 = scmp.ne.s32.totalorder %s104, %s105
      %p117 = scmp.eq.s32.totalorder %s27, 1
      %p118 = por %p116, %p117
      %p120 = scmp.ne.s32.totalorder %s105, %s119
      %p121 = scmp.eq.s32.totalorder %s27, 0
      %p122 = por %p120, %p121
      %s124 = sadd.s32 %s123, 1
      %p127 = scmp.eq.s32.totalorder %s21, 1
      %p128 = scmp.ne.s32.totalorder %s123, %s125
      %p129 = scmp.eq.s32.totalorder %s21, 0
      %p130 = por %p128, %p129
      %p131 = scmp.ne.s32.totalorder %s123, %s125
      %p132 = scmp.eq.s32.totalorder %s26, 1
      %p133 = por %p131, %p132
      %p134 = scmp.ne.s32.totalorder %s125, %s126
      %p135 = scmp.eq.s32.totalorder %s26, 0
      %p136 = por %p134, %p135
      %p137 = scmp.ne.s32.totalorder %s125, %s126
      %p138 = scmp.eq.s32.totalorder %s27, 1
      %p139 = por %p137, %p138
      %p141 = scmp.ne.s32.totalorder %s126, %s140
      %p142 = scmp.eq.s32.totalorder %s27, 0
      %p143 = por %p141, %p142
      %s145 = sadd.s32 %s144, 1
      %p148 = scmp.eq.s32.totalorder %s21, 1
      %p149 = scmp.ne.s32.totalorder %s144, %s146
      %p150 = scmp.eq.s32.totalorder %s21, 0
      %p151 = por %p149, %p150
      %p152 = scmp.ne.s32.totalorder %s144, %s146
      %p153 = scmp.eq.s32.totalorder %s26, 1
      %p154 = por %p152, %p153
      %p155 = scmp.ne.s32.totalorder %s146, %s147
      %p156 = scmp.eq.s32.totalorder %s26, 0
      %p157 = por %p155, %p156
      %p158 = scmp.ne.s32.totalorder %s146, %s147
      %p159 = scmp.eq.s32.totalorder %s27, 1
      %p160 = por %p158, %p159
      %p162 = scmp.ne.s32.totalorder %s147, %s161
      %p163 = scmp.eq.s32.totalorder %s27, 0
      %p164 = por %p162, %p163
      %s166 = sadd.s32 %s165, 1
      %p169 = scmp.eq.s32.totalorder %s21, 1
      %p170 = scmp.ne.s32.totalorder %s165, %s167
      %p171 = scmp.eq.s32.totalorder %s21, 0
      %p172 = por %p170, %p171
      %p173 = scmp.ne.s32.totalorder %s165, %s167
      %p174 = scmp.eq.s32.totalorder %s26, 1
      %p175 = por %p173, %p174
      %p176 = scmp.ne.s32.totalorder %s167, %s168
      %p177 = scmp.eq.s32.totalorder %s26, 0
      %p178 = por %p176, %p177
      %p179 = scmp.ne.s32.totalorder %s167, %s168
      %p180 = scmp.eq.s32.totalorder %s27, 1
      %p181 = por %p179, %p180
      %p183 = scmp.ne.s32.totalorder %s168, %s182
      %p184 = scmp.eq.s32.totalorder %s27, 0
      %p185 = por %p183, %p184
      %s187 = sadd.s32 %s186, 1
      %p190 = scmp.eq.s32.totalorder %s21, 1
      %p191 = scmp.ne.s32.totalorder %s186, %s188
      %p192 = scmp.eq.s32.totalorder %s21, 0
      %p193 = por %p191, %p192
      %p194 = scmp.ne.s32.totalorder %s186, %s188
      %p195 = scmp.eq.s32.totalorder %s26, 1
      %p196 = por %p194, %p195
      %p197 = scmp.ne.s32.totalorder %s188, %s189
      %p198 = scmp.eq.s32.totalorder %s26, 0
      %p199 = por %p197, %p198
      %p200 = scmp.ne.s32.totalorder %s188, %s189
      %p201 = scmp.eq.s32.totalorder %s27, 1
      %p202 = por %p200, %p201
      %p204 = scmp.ne.s32.totalorder %s189, %s203
      %p205 = scmp.eq.s32.totalorder %s27, 0
      %p206 = por %p204, %p205
      %s207 = ssub.s32 %s21, %s28
      %p208 = scmp.eq.s32.totalorder %s207, 0
      %s210 = sadd.s32 %s209, 1
      %s211 = scalar_select %p208, %s209, %s210
      %p214 = pneg %p208
      %p215 = scmp.eq.s32.totalorder %s21, 1
      %p216 = por %p214, %p215
      %p217 = scmp.ne.s32.totalorder %s209, %s212
      %p218 = scmp.eq.s32.totalorder %s21, 0
      %p219 = por %p217, %p218
      %p220 = scmp.ne.s32.totalorder %s209, %s212
      %p221 = scmp.eq.s32.totalorder %s26, 1
      %p222 = por %p220, %p221
      %p223 = scmp.ne.s32.totalorder %s212, %s213
      %p224 = scmp.eq.s32.totalorder %s26, 0
      %p225 = por %p223, %p224
      %p226 = scmp.ne.s32.totalorder %s212, %s213
      %p227 = scmp.eq.s32.totalorder %s27, 1
      %p228 = por %p226, %p227
      %p230 = scmp.ne.s32.totalorder %s213, %s229
      %p231 = scmp.eq.s32.totalorder %s27, 0
      %p232 = por %p230, %p231
      %p233 = scmp.le.s32.totalorder 1, %s21
      %p234 = scmp.lt.s32.totalorder %s21, 3
      %p235 = pnand %p233, %p234
      %p236 = pneg %p235
      // Predicated region
      $region9: #{tpu_custom_call.1} parent=5 // pred_check
        _
      $region10: #{tpu_custom_call.1} parent=5 // pred_check_branch
        %238 = sbr.rel (%p235) target = $region12
      $region11: #{tpu_custom_call.1} parent=5 // pred_region
        %s239 = ssub.s32 %s21, 1
        // Predicated region
        $region13: #{tpu_custom_call.1} parent=11 // pred_check
          %p240 = pneg %p94
        $region14: #{tpu_custom_call.1} parent=11 // pred_check_branch
          %242 = sbr.rel (%p240) target = $region16
        $region15: #{tpu_custom_call.1} parent=11 // pred_region
          %s244 = ssub.s32 256, 256
          %245 = vsyncadd [#allocation6], %s244
          %s246 = sshll.u32 [#allocation5], 4
          %s247 = int_to_ptr.vmem [resolvable:$true] %s246
          %252 = dma.hbm_to_vmem [thread:$0]  %s2, 256, %s247, [#allocation6], 64, 64, 4
        $region16: #{tpu_custom_call.1} parent=11 // pred_fallthru
          _
        // Predicated region
        $region17: #{tpu_custom_call.1} parent=11 // pred_check
          %p253 = pneg %p115
        $region18: #{tpu_custom_call.1} parent=11 // pred_check_branch
          %255 = sbr.rel (%p253) target = $region20
        $region19: #{tpu_custom_call.1} parent=11 // pred_region
          _
        $region20: #{tpu_custom_call.1} parent=11 // pred_fallthru
          _
        // Predicated region
        $region21: #{tpu_custom_call.1} parent=11 // pred_check
          %p256 = pneg %p136
        $region22: #{tpu_custom_call.1} parent=11 // pred_check_branch
          %258 = sbr.rel (%p256) target = $region24
        $region23: #{tpu_custom_call.1} parent=11 // pred_region
          %s260 = ssub.s32 256, 256
          %261 = vsyncadd [#allocation6], %s260
          %s262 = sshll.u32 [#allocation7], 4
          %s263 = int_to_ptr.vmem [resolvable:$true] %s262
          %268 = dma.hbm_to_vmem [thread:$0]  %s4, 256, %s263, [#allocation6], 64, 64, 4
        $region24: #{tpu_custom_call.1} parent=11 // pred_fallthru
          _
        // Predicated region
        $region25: #{tpu_custom_call.1} parent=11 // pred_check
          %p269 = pneg %p157
        $region26: #{tpu_custom_call.1} parent=11 // pred_check_branch
          %271 = sbr.rel (%p269) target = $region28
        $region27: #{tpu_custom_call.1} parent=11 // pred_region
          _
        $region28: #{tpu_custom_call.1} parent=11 // pred_fallthru
          _
        // Predicated region
        $region29: #{tpu_custom_call.1} parent=11 // pred_check
          %p272 = pneg %p178
        $region30: #{tpu_custom_call.1} parent=11 // pred_check_branch
          %274 = sbr.rel (%p272) target = $region32
        $region31: #{tpu_custom_call.1} parent=11 // pred_region
          _
        $region32: #{tpu_custom_call.1} parent=11 // pred_fallthru
          _
        // Predicated region
        $region33: #{tpu_custom_call.1} parent=11 // pred_check
          %p275 = pneg %p199
        $region34: #{tpu_custom_call.1} parent=11 // pred_check_branch
          %277 = sbr.rel (%p275) target = $region36
        $region35: #{tpu_custom_call.1} parent=11 // pred_region
          _
        $region36: #{tpu_custom_call.1} parent=11 // pred_fallthru
          _
      $region12: #{tpu_custom_call.1} parent=5 // pred_fallthru
        _
      %p278 = scmp.lt.s32.totalorder %s21, 2
      // Predicated region
      $region37: #{tpu_custom_call.1} parent=5 // pred_check
        %p279 = pneg %p278
      $region38: #{tpu_custom_call.1} parent=5 // pred_check_branch
        %281 = sbr.rel (%p279) target = $region40
      $region39: #{tpu_custom_call.1} parent=5 // pred_region
        // Predicated region
        $region41: #{tpu_custom_call.1} parent=39 // pred_check
          %p282 = pneg %p41
        $region42: #{tpu_custom_call.1} parent=39 // pred_check_branch
          %284 = sbr.rel (%p282) target = $region44
        $region43: #{tpu_custom_call.1} parent=39 // pred_region
          %s285 = sand.u32 %s31, 1
          %s286 = scalar_lea.sflag [#allocation3], %s285
          %s287 = sand.u32 %s31, 1
          %s288 = smul.addr %s287, 8
          %s289 = scalar_lea.vmem [#allocation2], %s288
          %s291 = ssub.s32 128, 128
          %292 = vsyncadd %s286, %s291
          %s293 = smul.addr %s21, 128
          %s294 = scalar_lea.hbm %s0, %s293
          %s296 = sshll.u32 %s289, 4
          %s297 = int_to_ptr.vmem [resolvable:$true] %s296
          %299 = dma.hbm_to_vmem [thread:$0]  %s294, 128, %s297, %s286
        $region44: #{tpu_custom_call.1} parent=39 // pred_fallthru
          _
        // Predicated region
        $region45: #{tpu_custom_call.1} parent=39 // pred_check
          %p300 = pneg %p67
        $region46: #{tpu_custom_call.1} parent=39 // pred_check_branch
          %302 = sbr.rel (%p300) target = $region48
        $region47: #{tpu_custom_call.1} parent=39 // pred_region
          %p303 = scmp.lt.s32.totalorder %s21, 1
          %s304 = scalar_select %p303, %s21, 1
          %s305 = scalar_lea.vmem %s1, %s304
        $region48: #{tpu_custom_call.1} parent=39 // pred_fallthru
          _
      $region40: #{tpu_custom_call.1} parent=5 // pred_fallthru
        _
      %p306 = scmp.le.s32.totalorder 1, %s21
      %p307 = scmp.lt.s32.totalorder %s21, 3
      %p308 = pnand %p306, %p307
      %p309 = pneg %p308
      // Predicated region
      $region49: #{tpu_custom_call.1} parent=5 // pred_check
        _
      $region50: #{tpu_custom_call.1} parent=5 // pred_check_branch
        %311 = sbr.rel (%p308) target = $region52
      $region51: #{tpu_custom_call.1} parent=5 // pred_region
        %s312 = ssub.s32 %s21, 1
        %s313 = sand.u32 %s34, 1
        %s314 = scalar_lea.sflag [#allocation3], %s313
        %s315 = sand.u32 %s34, 1
        %s316 = smul.addr %s315, 8
        %s317 = scalar_lea.vmem [#allocation2], %s316
        // Predicated region
        $region53: #{tpu_custom_call.1} parent=51 // pred_check
          %p318 = pneg %p47
        $region54: #{tpu_custom_call.1} parent=51 // pred_check_branch
          %320 = sbr.rel (%p318) target = $region56
        $region55: #{tpu_custom_call.1} parent=51 // pred_region
          %321 = dma.done %s314, 128
        $region56: #{tpu_custom_call.1} parent=51 // pred_fallthru
          _
        // Predicated region
        $region57: #{tpu_custom_call.1} parent=51 // pred_check
          %p322 = pneg %p94
        $region58: #{tpu_custom_call.1} parent=51 // pred_check_branch
          %324 = sbr.rel (%p322) target = $region60
        $region59: #{tpu_custom_call.1} parent=51 // pred_region
          %325 = dma.done [#allocation6], 256
        $region60: #{tpu_custom_call.1} parent=51 // pred_fallthru
          _
        // Predicated region
        $region61: #{tpu_custom_call.1} parent=51 // pred_check
          %p326 = pneg %p136
        $region62: #{tpu_custom_call.1} parent=51 // pred_check_branch
          %328 = sbr.rel (%p326) target = $region64
        $region63: #{tpu_custom_call.1} parent=51 // pred_region
          %329 = dma.done [#allocation6], 256
        $region64: #{tpu_custom_call.1} parent=51 // pred_fallthru
          _
        %s330 = sand.u32 %s34, 1
        %s331 = scalar_lea.sflag [#allocation3], %s330
        %s332 = sand.u32 %s34, 1
        %s333 = smul.addr %s332, 8
        %s334 = scalar_lea.vmem [#allocation2], %s333
        %p335 = pneg %p47
        %p336 = pneg %p44
        %p337 = scmp.lt.s32.totalorder %s26, 1
        %s338 = scalar_select %p337, %s26, 1
        %s339 = scalar_lea.vmem %s1, %s338
        %p340 = pneg %p73
        %p341 = pneg %p70
        %p342 = pneg %p94
        %p343 = pneg %p91
        %p344 = pneg %p115
        %p345 = pneg %p112
        %p346 = pneg %p136
        %p347 = pneg %p133
        %p348 = pneg %p157
        %p349 = pneg %p154
        %p350 = pneg %p178
        %p351 = pneg %p175
        %p352 = pneg %p199
        %p353 = pneg %p196
        %p354 = pneg %p225
        %p355 = pneg %p222
        %s356 = sand.u32 %s212, 1
        %s357 = scalar_lea.sflag [#allocation4], %s356
        %s358 = sand.u32 %s212, 1
        %s359 = smul.addr %s358, 8
        %s360 = scalar_lea.vmem [#allocation8], %s359
        %p361 = scmp.lt.s32.totalorder %s26, 1
        %s362 = scalar_select %p361, %s26, 1
        %s363 = scalar_lea.vmem %s1, %s362
        %v365 = vld [vmem:[%s317] sm:$0xff]
        %v366 = vld [vmem:[%s363] sm:$0x1]
        %v367 = vpack.c.bf16 %v365, %v365
        %v368 = vld [vmem:[#allocation5] sm:$0xf]
        %v369 = vld [vmem:[#allocation5 + $0x4] sm:$0xf]
        %v370 = vld [vmem:[#allocation5 + $0x8] sm:$0xf]
        %v371 = vld [vmem:[#allocation5 + $0xc] sm:$0xf]
        %v372 = vld [vmem:[%s3] sm:$0x1]
        %v374 = vlaneseq
        %v375 = vshrl.u32 %v374, 7
        %v376 = vsub.s32 0, %v375
        %v377 = vrot.slane %v372, %v376
        %v383 = vunpack.c.l.b16 %v368
        %v384 = vunpack.c.l.b16 %v369
        %v385 = vunpack.c.l.b16 %v370
        %v386 = vunpack.c.l.b16 %v371
        %v387 = vpack.c.b16 %v384, %v383
        %v388 = vpack.c.b16 %v386, %v385
        %vm391 = vcmask 261120
        %v393 = vsel %vm391, %v367, 0
        %395 = vmatprep.subr.bf16.mxu0 0
        %396 = vmatpush1.bf16.msra.mxu0 %v387
        %397 = vmatprep.subr.bf16.mxu0 0
        %398 = vmatpush1.bf16.msra.mxu0 %v388
        %399 = vmatprep.subr.bf16.mxu0 0
        %400 = vmatpush1.bf16.msra.mxu0 0
        %401 = vmatprep.subr.bf16.mxu0 0
        %402 = vmatpush1.bf16.msra.mxu0 0
        %403 = vmatprep.subr.bf16.mxu0 0
        %404 = vmatpush1.bf16.msra.mxu0 0
        %405 = vmatprep.subr.bf16.mxu0 0
        %406 = vmatpush1.bf16.msra.mxu0 0
        %407 = vmatprep.subr.bf16.mxu0 0
        %408 = vmatpush1.bf16.msra.mxu0 0
        %409 = vmatprep.subr.bf16.mxu0 0
        %410 = vmatpush1.bf16.msra.mxu0 0
        %411 = vmatprep.subr.bf16.mxu0 0
        %412 = vmatpush1.bf16.msra.mxu0 0
        %413 = vmatprep.subr.bf16.mxu0 0
        %414 = vmatpush1.bf16.msra.mxu0 0
        %415 = vmatprep.subr.bf16.mxu0 0
        %416 = vmatpush1.bf16.msra.mxu0 0
        %417 = vmatprep.subr.bf16.mxu0 0
        %418 = vmatpush1.bf16.msra.mxu0 0
        %419 = vmatprep.subr.bf16.mxu0 0
        %420 = vmatpush1.bf16.msra.mxu0 0
        %421 = vmatprep.subr.bf16.mxu0 0
        %422 = vmatpush1.bf16.msra.mxu0 0
        %423 = vmatprep.subr.bf16.mxu0 0
        %424 = vmatpush1.bf16.msra.mxu0 0
        %425 = vmatprep.subr.bf16.mxu0 0
        %426 = vmatpush1.bf16.msra.mxu0 0
        %427 = vmatprep.mubr.bf16.mxu0 0
        %428 = vmatmul.mubr.bf16.gmra.mrb[0].mxu0 %v393
        %v429 = vpop.f32.mrb[0].mxu0
        %v430 = vadd.f32 %v377, %v429
        %v431 = vpop.f32.mrb[0].mxu0
        %v432 = vpop.f32.mrb[0].mxu0
        %v433 = vpop.f32.mrb[0].mxu0
        %434 = vdwg.mxu0
        %436 = vrot.lane.b32.xlu0 %v430, 120
        %v437 = vpop.permute.xlu0 %436
        %439 = vrot.lane.b32.xlu0 %v430, 112
        %v440 = vpop.permute.xlu0 %439
        %442 = vrot.lane.b32.xlu0 %v430, 104
        %v443 = vpop.permute.xlu0 %442
        %v445 = vpack.c.bf16 %v430, %v430
        %v446 = vpack.c.bf16 %v437, %v437
        %v447 = vpack.c.bf16 %v440, %v440
        %v448 = vpack.c.bf16 %v443, %v443
        %450 = vrot.lane.b32.xlu0 %v445, 96
        %v451 = vpop.permute.xlu0 %450
        %vm452 = vcmask 64512
        %v454 = vsel %vm452, %v445, 0
        %v457 = vsel %vm452, %v451, 0
        %459 = vmatprep.subr.bf16.mxu0 0
        %460 = vmatpush1.bf16.xpose.msra.mxu0 %v457
        %461 = vmatprep.subr.bf16.mxu0 0
        %462 = vmatpush1.bf16.xpose.msra.mxu0 0
        %463 = vmatprep.subr.bf16.mxu0 0
        %464 = vmatpush1.bf16.xpose.msra.mxu0 0
        %465 = vmatprep.subr.bf16.mxu0 0
        %466 = vmatpush1.bf16.xpose.msra.mxu0 0
        %467 = vmatprep.subr.bf16.mxu0 0
        %468 = vmatpush1.bf16.xpose.msra.mxu0 0
        %469 = vmatprep.subr.bf16.mxu0 0
        %470 = vmatpush1.bf16.xpose.msra.mxu0 0
        %471 = vmatprep.subr.bf16.mxu0 0
        %472 = vmatpush1.bf16.xpose.msra.mxu0 0
        %473 = vmatprep.subr.bf16.mxu0 0
        %474 = vmatpush1.bf16.xpose.msra.mxu0 0
        %475 = vmatprep.subr.bf16.mxu0 0
        %476 = vmatpush1.bf16.xpose.msra.mxu0 0
        %477 = vmatprep.subr.bf16.mxu0 0
        %478 = vmatpush1.bf16.xpose.msra.mxu0 0
        %479 = vmatprep.subr.bf16.mxu0 0
        %480 = vmatpush1.bf16.xpose.msra.mxu0 0
        %481 = vmatprep.subr.bf16.mxu0 0
        %482 = vmatpush1.bf16.xpose.msra.mxu0 0
        %483 = vmatprep.subr.bf16.mxu0 0
        %484 = vmatpush1.bf16.xpose.msra.mxu0 0
        %485 = vmatprep.subr.bf16.mxu0 0
        %486 = vmatpush1.bf16.xpose.msra.mxu0 0
        %487 = vmatprep.subr.bf16.mxu0 0
        %488 = vmatpush1.bf16.xpose.msra.mxu0 0
        %489 = vmatprep.subr.bf16.mxu0 0
        %490 = vmatpush1.bf16.xpose.msra.mxu0 0
        %491 = vmatprep.mubr.bf16.mxu0 0
        %492 = vmatmul.mubr.bf16.gmra.mrb[0].mxu0 %v454
        %v493 = vpop.f32.mrb[0].mxu0
        %v494 = vadd.f32 0.0, %v493
        %v495 = vpop.f32.mrb[0].mxu0
        %v496 = vpop.f32.mrb[0].mxu0
        %v497 = vpop.f32.mrb[0].mxu0
        %498 = vdwg.mxu0
        %500 = vrot.lane.b32.xlu0 %v446, 96
        %v501 = vpop.permute.xlu0 %500
        %v503 = vsel %vm452, %v446, 0
        %v506 = vsel %vm452, %v501, 0
        %508 = vmatprep.subr.bf16.mxu0 0
        %509 = vmatpush1.bf16.xpose.msra.mxu0 %v506
        %510 = vmatprep.subr.bf16.mxu0 0
        %511 = vmatpush1.bf16.xpose.msra.mxu0 0
        %512 = vmatprep.subr.bf16.mxu0 0
        %513 = vmatpush1.bf16.xpose.msra.mxu0 0
        %514 = vmatprep.subr.bf16.mxu0 0
        %515 = vmatpush1.bf16.xpose.msra.mxu0 0
        %516 = vmatprep.subr.bf16.mxu0 0
        %517 = vmatpush1.bf16.xpose.msra.mxu0 0
        %518 = vmatprep.subr.bf16.mxu0 0
        %519 = vmatpush1.bf16.xpose.msra.mxu0 0
        %520 = vmatprep.subr.bf16.mxu0 0
        %521 = vmatpush1.bf16.xpose.msra.mxu0 0
        %522 = vmatprep.subr.bf16.mxu0 0
        %523 = vmatpush1.bf16.xpose.msra.mxu0 0
        %524 = vmatprep.subr.bf16.mxu0 0
        %525 = vmatpush1.bf16.xpose.msra.mxu0 0
        %526 = vmatprep.subr.bf16.mxu0 0
        %527 = vmatpush1.bf16.xpose.msra.mxu0 0
        %528 = vmatprep.subr.bf16.mxu0 0
        %529 = vmatpush1.bf16.xpose.msra.mxu0 0
        %530 = vmatprep.subr.bf16.mxu0 0
        %531 = vmatpush1.bf16.xpose.msra.mxu0 0
        %532 = vmatprep.subr.bf16.mxu0 0
        %533 = vmatpush1.bf16.xpose.msra.mxu0 0
        %534 = vmatprep.subr.bf16.mxu0 0
        %535 = vmatpush1.bf16.xpose.msra.mxu0 0
        %536 = vmatprep.subr.bf16.mxu0 0
        %537 = vmatpush1.bf16.xpose.msra.mxu0 0
        %538 = vmatprep.subr.bf16.mxu0 0
        %539 = vmatpush1.bf16.xpose.msra.mxu0 0
        %540 = vmatprep.mubr.bf16.mxu0 0
        %541 = vmatmul.mubr.bf16.gmra.mrb[0].mxu0 %v503
        %v542 = vpop.f32.mrb[0].mxu0
        %v543 = vadd.f32 0.0, %v542
        %v544 = vpop.f32.mrb[0].mxu0
        %v545 = vpop.f32.mrb[0].mxu0
        %v546 = vpop.f32.mrb[0].mxu0
        %547 = vdwg.mxu0
        %549 = vrot.lane.b32.xlu0 %v447, 96
        %v550 = vpop.permute.xlu0 %549
        %v552 = vsel %vm452, %v447, 0
        %v555 = vsel %vm452, %v550, 0
        %557 = vmatprep.subr.bf16.mxu0 0
        %558 = vmatpush1.bf16.xpose.msra.mxu0 %v555
        %559 = vmatprep.subr.bf16.mxu0 0
        %560 = vmatpush1.bf16.xpose.msra.mxu0 0
        %561 = vmatprep.subr.bf16.mxu0 0
        %562 = vmatpush1.bf16.xpose.msra.mxu0 0
        %563 = vmatprep.subr.bf16.mxu0 0
        %564 = vmatpush1.bf16.xpose.msra.mxu0 0
        %565 = vmatprep.subr.bf16.mxu0 0
        %566 = vmatpush1.bf16.xpose.msra.mxu0 0
        %567 = vmatprep.subr.bf16.mxu0 0
        %568 = vmatpush1.bf16.xpose.msra.mxu0 0
        %569 = vmatprep.subr.bf16.mxu0 0
        %570 = vmatpush1.bf16.xpose.msra.mxu0 0
        %571 = vmatprep.subr.bf16.mxu0 0
        %572 = vmatpush1.bf16.xpose.msra.mxu0 0
        %573 = vmatprep.subr.bf16.mxu0 0
        %574 = vmatpush1.bf16.xpose.msra.mxu0 0
        %575 = vmatprep.subr.bf16.mxu0 0
        %576 = vmatpush1.bf16.xpose.msra.mxu0 0
        %577 = vmatprep.subr.bf16.mxu0 0
        %578 = vmatpush1.bf16.xpose.msra.mxu0 0
        %579 = vmatprep.subr.bf16.mxu0 0
        %580 = vmatpush1.bf16.xpose.msra.mxu0 0
        %581 = vmatprep.subr.bf16.mxu0 0
        %582 = vmatpush1.bf16.xpose.msra.mxu0 0
        %583 = vmatprep.subr.bf16.mxu0 0
        %584 = vmatpush1.bf16.xpose.msra.mxu0 0
        %585 = vmatprep.subr.bf16.mxu0 0
        %586 = vmatpush1.bf16.xpose.msra.mxu0 0
        %587 = vmatprep.subr.bf16.mxu0 0
        %588 = vmatpush1.bf16.xpose.msra.mxu0 0
        %589 = vmatprep.mubr.bf16.mxu0 0
        %590 = vmatmul.mubr.bf16.gmra.mrb[0].mxu0 %v552
        %v591 = vpop.f32.mrb[0].mxu0
        %v592 = vadd.f32 0.0, %v591
        %v593 = vpop.f32.mrb[0].mxu0
        %v594 = vpop.f32.mrb[0].mxu0
        %v595 = vpop.f32.mrb[0].mxu0
        %596 = vdwg.mxu0
        %598 = vrot.lane.b32.xlu0 %v448, 96
        %v599 = vpop.permute.xlu0 %598
        %v601 = vsel %vm452, %v448, 0
        %v604 = vsel %vm452, %v599, 0
        %606 = vmatprep.subr.bf16.mxu0 0
        %607 = vmatpush1.bf16.xpose.msra.mxu0 %v604
        %608 = vmatprep.subr.bf16.mxu0 0
        %609 = vmatpush1.bf16.xpose.msra.mxu0 0
        %610 = vmatprep.subr.bf16.mxu0 0
        %611 = vmatpush1.bf16.xpose.msra.mxu0 0
        %612 = vmatprep.subr.bf16.mxu0 0
        %613 = vmatpush1.bf16.xpose.msra.mxu0 0
        %614 = vmatprep.subr.bf16.mxu0 0
        %615 = vmatpush1.bf16.xpose.msra.mxu0 0
        %616 = vmatprep.subr.bf16.mxu0 0
        %617 = vmatpush1.bf16.xpose.msra.mxu0 0
        %618 = vmatprep.subr.bf16.mxu0 0
        %619 = vmatpush1.bf16.xpose.msra.mxu0 0
        %620 = vmatprep.subr.bf16.mxu0 0
        %621 = vmatpush1.bf16.xpose.msra.mxu0 0
        %622 = vmatprep.subr.bf16.mxu0 0
        %623 = vmatpush1.bf16.xpose.msra.mxu0 0
        %624 = vmatprep.subr.bf16.mxu0 0
        %625 = vmatpush1.bf16.xpose.msra.mxu0 0
        %626 = vmatprep.subr.bf16.mxu0 0
        %627 = vmatpush1.bf16.xpose.msra.mxu0 0
        %628 = vmatprep.subr.bf16.mxu0 0
        %629 = vmatpush1.bf16.xpose.msra.mxu0 0
        %630 = vmatprep.subr.bf16.mxu0 0
        %631 = vmatpush1.bf16.xpose.msra.mxu0 0
        %632 = vmatprep.subr.bf16.mxu0 0
        %633 = vmatpush1.bf16.xpose.msra.mxu0 0
        %634 = vmatprep.subr.bf16.mxu0 0
        %635 = vmatpush1.bf16.xpose.msra.mxu0 0
        %636 = vmatprep.subr.bf16.mxu0 0
        %637 = vmatpush1.bf16.xpose.msra.mxu0 0
        %638 = vmatprep.mubr.bf16.mxu0 0
        %639 = vmatmul.mubr.bf16.gmra.mrb[0].mxu0 %v601
        %v640 = vpop.f32.mrb[0].mxu0
        %v641 = vadd.f32 0.0, %v640
        %v642 = vpop.f32.mrb[0].mxu0
        %v643 = vpop.f32.mrb[0].mxu0
        %v644 = vpop.f32.mrb[0].mxu0
        %645 = vdwg.mxu0
        %v646 = vmul.f32 %v494, 0.35355338
        %v647 = vmul.f32 %v543, 0.35355338
        %v648 = vmul.f32 %v592, 0.35355338
        %v649 = vmul.f32 %v641, 0.35355338
        %v651 = vlaneseq
        %v652 = vshrl.u32 %v651, 7
        %v653 = vsub.s32 0, %v652
        %v654 = vrot.slane %v366, %v653
        %v656 = vadd.f32 %v646, %v654
        %v657 = vadd.f32 %v647, %v654
        %v658 = vadd.f32 %v648, %v654
        %v659 = vadd.f32 %v649, %v654
        %v660 = vsel %vm452, %v656, -inf
        %661 = vmax.xlane.f32.xlu0 %v660
        %v662 = vpop.xlane.xlu0 %661
        %v663 = vsel %vm452, %v657, -inf
        %664 = vmax.xlane.f32.xlu0 %v663
        %v665 = vpop.xlane.xlu0 %664
        %v666 = vsel %vm452, %v658, -inf
        %667 = vmax.xlane.f32.xlu0 %v666
        %v668 = vpop.xlane.xlu0 %667
        %v669 = vsel %vm452, %v659, -inf
        %670 = vmax.xlane.f32.xlu0 %v669
        %v671 = vpop.xlane.xlu0 %670
        %v672 = vsub.f32 %v656, %v662
        %v673 = vsub.f32 %v657, %v665
        %v674 = vsub.f32 %v658, %v668
        %v675 = vsub.f32 %v659, %v671
        %v676 = vmul.f32 %v672, 1.442695
        %v677 = vpow.pop %v676
        %v678 = vmul.f32 %v673, 1.442695
        %v679 = vpow.pop %v678
        %v680 = vmul.f32 %v674, 1.442695
        %v681 = vpow.pop %v680
        %v682 = vmul.f32 %v675, 1.442695
        %v683 = vpow.pop %v682
        %v684 = vsel %vm452, %v677, 0.0
        %685 = vadd.xlane.f32.xlu0 %v684
        %v686 = vpop.xlane.xlu0 %685
        %v687 = vsel %vm452, %v679, 0.0
        %688 = vadd.xlane.f32.xlu0 %v687
        %v689 = vpop.xlane.xlu0 %688
        %v690 = vsel %vm452, %v681, 0.0
        %691 = vadd.xlane.f32.xlu0 %v690
        %v692 = vpop.xlane.xlu0 %691
        %v693 = vsel %vm452, %v683, 0.0
        %694 = vadd.xlane.f32.xlu0 %v693
        %v695 = vpop.xlane.xlu0 %694
        %v696 = vrcp.pop %v686
        %v697 = vrcp.pop %v689
        %v698 = vrcp.pop %v692
        %v699 = vrcp.pop %v695
        %v700 = vmul.f32 %v677, %v696
        %v701 = vmul.f32 %v679, %v697
        %v702 = vmul.f32 %v681, %v698
        %v703 = vmul.f32 %v683, %v699
        %v704 = vpack.c.bf16 %v700, %v700
        %v705 = vpack.c.bf16 %v701, %v701
        %v706 = vpack.c.bf16 %v702, %v702
        %v707 = vpack.c.bf16 %v703, %v703
        %708 = vrot.lane.b32.xlu0 %v445, 64
        %v709 = vpop.permute.xlu0 %708
        %v711 = vsel %vm452, %v704, 0
        %vm713 = vcmask 1043456
        %v715 = vsel %vm713, %v709, 0
        %717 = vmatprep.subr.bf16.mxu0 0
        %718 = vmatpush1.bf16.msra.mxu0 %v715
        %719 = vmatprep.subr.bf16.mxu0 0
        %720 = vmatpush1.bf16.msra.mxu0 0
        %721 = vmatprep.subr.bf16.mxu0 0
        %722 = vmatpush1.bf16.msra.mxu0 0
        %723 = vmatprep.subr.bf16.mxu0 0
        %724 = vmatpush1.bf16.msra.mxu0 0
        %725 = vmatprep.subr.bf16.mxu0 0
        %726 = vmatpush1.bf16.msra.mxu0 0
        %727 = vmatprep.subr.bf16.mxu0 0
        %728 = vmatpush1.bf16.msra.mxu0 0
        %729 = vmatprep.subr.bf16.mxu0 0
        %730 = vmatpush1.bf16.msra.mxu0 0
        %731 = vmatprep.subr.bf16.mxu0 0
        %732 = vmatpush1.bf16.msra.mxu0 0
        %733 = vmatprep.subr.bf16.mxu0 0
        %734 = vmatpush1.bf16.msra.mxu0 0
        %735 = vmatprep.subr.bf16.mxu0 0
        %736 = vmatpush1.bf16.msra.mxu0 0
        %737 = vmatprep.subr.bf16.mxu0 0
        %738 = vmatpush1.bf16.msra.mxu0 0
        %739 = vmatprep.subr.bf16.mxu0 0
        %740 = vmatpush1.bf16.msra.mxu0 0
        %741 = vmatprep.subr.bf16.mxu0 0
        %742 = vmatpush1.bf16.msra.mxu0 0
        %743 = vmatprep.subr.bf16.mxu0 0
        %744 = vmatpush1.bf16.msra.mxu0 0
        %745 = vmatprep.subr.bf16.mxu0 0
        %746 = vmatpush1.bf16.msra.mxu0 0
        %747 = vmatprep.subr.bf16.mxu0 0
        %748 = vmatpush1.bf16.msra.mxu0 0
        %749 = vmatprep.mubr.bf16.mxu0 0
        %750 = vmatmul.mubr.bf16.gmra.mrb[0].mxu0 %v711
        %v751 = vpop.f32.mrb[0].mxu0
        %v752 = vadd.f32 0.0, %v751
        %v753 = vpop.f32.mrb[0].mxu0
        %v754 = vpop.f32.mrb[0].mxu0
        %v755 = vpop.f32.mrb[0].mxu0
        %756 = vdwg.mxu0
        %757 = vrot.lane.b32.xlu0 %v446, 64
        %v758 = vpop.permute.xlu0 %757
        %v760 = vsel %vm452, %v705, 0
        %v763 = vsel %vm713, %v758, 0
        %765 = vmatprep.subr.bf16.mxu0 0
        %766 = vmatpush1.bf16.msra.mxu0 %v763
        %767 = vmatprep.subr.bf16.mxu0 0
        %768 = vmatpush1.bf16.msra.mxu0 0
        %769 = vmatprep.subr.bf16.mxu0 0
        %770 = vmatpush1.bf16.msra.mxu0 0
        %771 = vmatprep.subr.bf16.mxu0 0
        %772 = vmatpush1.bf16.msra.mxu0 0
        %773 = vmatprep.subr.bf16.mxu0 0
        %774 = vmatpush1.bf16.msra.mxu0 0
        %775 = vmatprep.subr.bf16.mxu0 0
        %776 = vmatpush1.bf16.msra.mxu0 0
        %777 = vmatprep.subr.bf16.mxu0 0
        %778 = vmatpush1.bf16.msra.mxu0 0
        %779 = vmatprep.subr.bf16.mxu0 0
        %780 = vmatpush1.bf16.msra.mxu0 0
        %781 = vmatprep.subr.bf16.mxu0 0
        %782 = vmatpush1.bf16.msra.mxu0 0
        %783 = vmatprep.subr.bf16.mxu0 0
        %784 = vmatpush1.bf16.msra.mxu0 0
        %785 = vmatprep.subr.bf16.mxu0 0
        %786 = vmatpush1.bf16.msra.mxu0 0
        %787 = vmatprep.subr.bf16.mxu0 0
        %788 = vmatpush1.bf16.msra.mxu0 0
        %789 = vmatprep.subr.bf16.mxu0 0
        %790 = vmatpush1.bf16.msra.mxu0 0
        %791 = vmatprep.subr.bf16.mxu0 0
        %792 = vmatpush1.bf16.msra.mxu0 0
        %793 = vmatprep.subr.bf16.mxu0 0
        %794 = vmatpush1.bf16.msra.mxu0 0
        %795 = vmatprep.subr.bf16.mxu0 0
        %796 = vmatpush1.bf16.msra.mxu0 0
        %797 = vmatprep.mubr.bf16.mxu0 0
        %798 = vmatmul.mubr.bf16.gmra.mrb[0].mxu0 %v760
        %v799 = vpop.f32.mrb[0].mxu0
        %v800 = vadd.f32 0.0, %v799
        %v801 = vpop.f32.mrb[0].mxu0
        %v802 = vpop.f32.mrb[0].mxu0
        %v803 = vpop.f32.mrb[0].mxu0
        %804 = vdwg.mxu0
        %805 = vrot.lane.b32.xlu0 %v447, 64
        %v806 = vpop.permute.xlu0 %805
        %v808 = vsel %vm452, %v706, 0
        %v811 = vsel %vm713, %v806, 0
        %813 = vmatprep.subr.bf16.mxu0 0
        %814 = vmatpush1.bf16.msra.mxu0 %v811
        %815 = vmatprep.subr.bf16.mxu0 0
        %816 = vmatpush1.bf16.msra.mxu0 0
        %817 = vmatprep.subr.bf16.mxu0 0
        %818 = vmatpush1.bf16.msra.mxu0 0
        %819 = vmatprep.subr.bf16.mxu0 0
        %820 = vmatpush1.bf16.msra.mxu0 0
        %821 = vmatprep.subr.bf16.mxu0 0
        %822 = vmatpush1.bf16.msra.mxu0 0
        %823 = vmatprep.subr.bf16.mxu0 0
        %824 = vmatpush1.bf16.msra.mxu0 0
        %825 = vmatprep.subr.bf16.mxu0 0
        %826 = vmatpush1.bf16.msra.mxu0 0
        %827 = vmatprep.subr.bf16.mxu0 0
        %828 = vmatpush1.bf16.msra.mxu0 0
        %829 = vmatprep.subr.bf16.mxu0 0
        %830 = vmatpush1.bf16.msra.mxu0 0
        %831 = vmatprep.subr.bf16.mxu0 0
        %832 = vmatpush1.bf16.msra.mxu0 0
        %833 = vmatprep.subr.bf16.mxu0 0
        %834 = vmatpush1.bf16.msra.mxu0 0
        %835 = vmatprep.subr.bf16.mxu0 0
        %836 = vmatpush1.bf16.msra.mxu0 0
        %837 = vmatprep.subr.bf16.mxu0 0
        %838 = vmatpush1.bf16.msra.mxu0 0
        %839 = vmatprep.subr.bf16.mxu0 0
        %840 = vmatpush1.bf16.msra.mxu0 0
        %841 = vmatprep.subr.bf16.mxu0 0
        %842 = vmatpush1.bf16.msra.mxu0 0
        %843 = vmatprep.subr.bf16.mxu0 0
        %844 = vmatpush1.bf16.msra.mxu0 0
        %845 = vmatprep.mubr.bf16.mxu0 0
        %846 = vmatmul.mubr.bf16.gmra.mrb[0].mxu0 %v808
        %v847 = vpop.f32.mrb[0].mxu0
        %v848 = vadd.f32 0.0, %v847
        %v849 = vpop.f32.mrb[0].mxu0
        %v850 = vpop.f32.mrb[0].mxu0
        %v851 = vpop.f32.mrb[0].mxu0
        %852 = vdwg.mxu0
        %853 = vrot.lane.b32.xlu0 %v448, 64
        %v854 = vpop.permute.xlu0 %853
        %v856 = vsel %vm452, %v707, 0
        %v859 = vsel %vm713, %v854, 0
        %861 = vmatprep.subr.bf16.mxu0 0
        %862 = vmatpush1.bf16.msra.mxu0 %v859
        %863 = vmatprep.subr.bf16.mxu0 0
        %864 = vmatpush1.bf16.msra.mxu0 0
        %865 = vmatprep.subr.bf16.mxu0 0
        %866 = vmatpush1.bf16.msra.mxu0 0
        %867 = vmatprep.subr.bf16.mxu0 0
        %868 = vmatpush1.bf16.msra.mxu0 0
        %869 = vmatprep.subr.bf16.mxu0 0
        %870 = vmatpush1.bf16.msra.mxu0 0
        %871 = vmatprep.subr.bf16.mxu0 0
        %872 = vmatpush1.bf16.msra.mxu0 0
        %873 = vmatprep.subr.bf16.mxu0 0
        %874 = vmatpush1.bf16.msra.mxu0 0
        %875 = vmatprep.subr.bf16.mxu0 0
        %876 = vmatpush1.bf16.msra.mxu0 0
        %877 = vmatprep.subr.bf16.mxu0 0
        %878 = vmatpush1.bf16.msra.mxu0 0
        %879 = vmatprep.subr.bf16.mxu0 0
        %880 = vmatpush1.bf16.msra.mxu0 0
        %881 = vmatprep.subr.bf16.mxu0 0
        %882 = vmatpush1.bf16.msra.mxu0 0
        %883 = vmatprep.subr.bf16.mxu0 0
        %884 = vmatpush1.bf16.msra.mxu0 0
        %885 = vmatprep.subr.bf16.mxu0 0
        %886 = vmatpush1.bf16.msra.mxu0 0
        %887 = vmatprep.subr.bf16.mxu0 0
        %888 = vmatpush1.bf16.msra.mxu0 0
        %889 = vmatprep.subr.bf16.mxu0 0
        %890 = vmatpush1.bf16.msra.mxu0 0
        %891 = vmatprep.subr.bf16.mxu0 0
        %892 = vmatpush1.bf16.msra.mxu0 0
        %893 = vmatprep.mubr.bf16.mxu0 0
        %894 = vmatmul.mubr.bf16.gmra.mrb[0].mxu0 %v856
        %v895 = vpop.f32.mrb[0].mxu0
        %v896 = vadd.f32 0.0, %v895
        %v897 = vpop.f32.mrb[0].mxu0
        %v898 = vpop.f32.mrb[0].mxu0
        %v899 = vpop.f32.mrb[0].mxu0
        %900 = vdwg.mxu0
        %902 = vrot.lane.b32.xlu0 %v800, 8
        %v903 = vpop.permute.xlu0 %902
        %906 = vrot.lane.b32.xlu0 %v848, 16
        %v907 = vpop.permute.xlu0 %906
        %910 = vrot.lane.b32.xlu0 %v896, 24
        %v911 = vpop.permute.xlu0 %910
        %v913 = vsel %vm452, %v752, %v903
        %vm914 = vcmask 130048
        %v915 = vsel %vm914, %v913, %v907
        %vm916 = vcmask 195584
        %v917 = vsel %vm916, %v915, %v911
        %v918 = vpack.c.bf16 %v917, %v917
        %v919 = vld [vmem:[#allocation7] sm:$0xf]
        %v920 = vld [vmem:[#allocation7 + $0x4] sm:$0xf]
        %v921 = vld [vmem:[#allocation7 + $0x8] sm:$0xf]
        %v922 = vld [vmem:[#allocation7 + $0xc] sm:$0xf]
        %v923 = vld [vmem:[%s5] sm:$0x1]
        %v925 = vlaneseq
        %v926 = vshrl.u32 %v925, 7
        %v927 = vsub.s32 0, %v926
        %v928 = vrot.slane %v923, %v927
        %v934 = vunpack.c.l.b16 %v919
        %v935 = vunpack.c.l.b16 %v920
        %v936 = vunpack.c.l.b16 %v921
        %v937 = vunpack.c.l.b16 %v922
        %v938 = vpack.c.b16 %v935, %v934
        %v939 = vpack.c.b16 %v937, %v936
        %v943 = vsel %vm391, %v918, 0
        %945 = vmatprep.subr.bf16.mxu0 0
        %946 = vmatpush1.bf16.msra.mxu0 %v938
        %947 = vmatprep.subr.bf16.mxu0 0
        %948 = vmatpush1.bf16.msra.mxu0 %v939
        %949 = vmatprep.subr.bf16.mxu0 0
        %950 = vmatpush1.bf16.msra.mxu0 0
        %951 = vmatprep.subr.bf16.mxu0 0
        %952 = vmatpush1.bf16.msra.mxu0 0
        %953 = vmatprep.subr.bf16.mxu0 0
        %954 = vmatpush1.bf16.msra.mxu0 0
        %955 = vmatprep.subr.bf16.mxu0 0
        %956 = vmatpush1.bf16.msra.mxu0 0
        %957 = vmatprep.subr.bf16.mxu0 0
        %958 = vmatpush1.bf16.msra.mxu0 0
        %959 = vmatprep.subr.bf16.mxu0 0
        %960 = vmatpush1.bf16.msra.mxu0 0
        %961 = vmatprep.subr.bf16.mxu0 0
        %962 = vmatpush1.bf16.msra.mxu0 0
        %963 = vmatprep.subr.bf16.mxu0 0
        %964 = vmatpush1.bf16.msra.mxu0 0
        %965 = vmatprep.subr.bf16.mxu0 0
        %966 = vmatpush1.bf16.msra.mxu0 0
        %967 = vmatprep.subr.bf16.mxu0 0
        %968 = vmatpush1.bf16.msra.mxu0 0
        %969 = vmatprep.subr.bf16.mxu0 0
        %970 = vmatpush1.bf16.msra.mxu0 0
        %971 = vmatprep.subr.bf16.mxu0 0
        %972 = vmatpush1.bf16.msra.mxu0 0
        %973 = vmatprep.subr.bf16.mxu0 0
        %974 = vmatpush1.bf16.msra.mxu0 0
        %975 = vmatprep.subr.bf16.mxu0 0
        %976 = vmatpush1.bf16.msra.mxu0 0
        %977 = vmatprep.mubr.bf16.mxu0 0
        %978 = vmatmul.mubr.bf16.gmra.mrb[0].mxu0 %v943
        %v979 = vpop.f32.mrb[0].mxu0
        %v980 = vadd.f32 %v928, %v979
        %v981 = vpop.f32.mrb[0].mxu0
        %v982 = vpop.f32.mrb[0].mxu0
        %v983 = vpop.f32.mrb[0].mxu0
        %984 = vdwg.mxu0
        %v985 = vadd.f32 %v980, %v365
        %v986 = vsel %vm391, %v985, 0.0
        %987 = vadd.xlane.f32.xlu0 %v986
        %v988 = vpop.xlane.xlu0 %987
        %v989 = vrcp.pop 32.0
        %v990 = vmul.f32 %v988, %v989
        %v991 = vsub.f32 %v985, %v990
        %v992 = vmul.f32 %v991, %v991
        %v993 = vsel %vm391, %v992, 0.0
        %994 = vadd.xlane.f32.xlu0 %v993
        %v995 = vpop.xlane.xlu0 %994
        %v996 = vmul.f32 %v995, %v989
        %v997 = vadd.f32 %v996, 1e-12
        %v998 = vrsqrt.pop %v997
        %v999 = vmul.f32 %v991, %v998
        %v1000 = vld [vmem:[%s6] sm:$0x1]
        %v1002 = vlaneseq
        %v1003 = vshrl.u32 %v1002, 7
        %v1004 = vsub.s32 0, %v1003
        %v1005 = vrot.slane %v1000, %v1004
        %v1007 = vmul.f32 %v999, %v1005
        %v1008 = vld [vmem:[%s7] sm:$0x1]
        %v1010 = vlaneseq
        %v1011 = vshrl.u32 %v1010, 7
        %v1012 = vsub.s32 0, %v1011
        %v1013 = vrot.slane %v1008, %v1012
        %v1015 = vadd.f32 %v1007, %v1013
        %1016 = vst.msk [vmem:[%s360] sm:$0xff] %vm391, %v1015
        %s1017 = sand.u32 %s212, 1
        %s1018 = scalar_lea.sflag [#allocation4], %s1017
        %s1019 = sand.u32 %s212, 1
        %s1020 = smul.addr %s1019, 8
        %s1021 = scalar_lea.vmem [#allocation8], %s1020
        // Predicated region
        $region65: #{tpu_custom_call.1} parent=51 // pred_check
          %p1022 = pneg %p222
        $region66: #{tpu_custom_call.1} parent=51 // pred_check_branch
          %1024 = sbr.rel (%p1022) target = $region68
        $region67: #{tpu_custom_call.1} parent=51 // pred_region
          %s1026 = ssub.s32 128, 128
          %1027 = vsyncadd %s1018, %s1026
          %s1028 = smul.addr %s26, 128
          %s1029 = scalar_lea.hbm %s8, %s1028
          %s1031 = sshll.u32 %s1021, 4
          %s1032 = int_to_ptr.vmem [resolvable:$true] %s1031
          %1034 = dma.vmem_to_hbm [thread:$0]  %s1032, 128, %s1029, %s1018
        $region68: #{tpu_custom_call.1} parent=51 // pred_fallthru
          _
      $region52: #{tpu_custom_call.1} parent=5 // pred_fallthru
        _
      %p1035 = scmp.le.s32.totalorder 2, %s21
      // Predicated region
      $region69: #{tpu_custom_call.1} parent=5 // pred_check
        %p1036 = pneg %p1035
      $region70: #{tpu_custom_call.1} parent=5 // pred_check_branch
        %1038 = sbr.rel (%p1036) target = $region72
      $region71: #{tpu_custom_call.1} parent=5 // pred_region
        %s1039 = ssub.s32 %s21, 2
        // Predicated region
        $region73: #{tpu_custom_call.1} parent=71 // pred_check
          %p1040 = pneg %p228
        $region74: #{tpu_custom_call.1} parent=71 // pred_check_branch
          %1042 = sbr.rel (%p1040) target = $region76
        $region75: #{tpu_custom_call.1} parent=71 // pred_region
          %s1043 = sand.u32 %s213, 1
          %s1044 = scalar_lea.sflag [#allocation4], %s1043
          %s1045 = sand.u32 %s213, 1
          %s1046 = smul.addr %s1045, 8
          %s1047 = scalar_lea.vmem [#allocation8], %s1046
          %1048 = dma.done %s1044, 128
        $region76: #{tpu_custom_call.1} parent=71 // pred_fallthru
          _
      $region72: #{tpu_custom_call.1} parent=5 // pred_fallthru
        _
    $region6: #{tpu_custom_call.1} parent=1 // loop_footer
      %s25 = sadd.s32 1, %s21
    $region7: #{tpu_custom_call.1} parent=1 // loop_footer_branch
      %20 = sbr.rel target = $region3
    $region8: #{tpu_custom_call.1} parent=1 // loop_exit
      _
    %1049 = vsyncpa [#allocation3], 1
    %s1050 = scalar_lea.sflag [#allocation3], 1
    %1051 = vsyncpa %s1050, 1
    %1052 = vsyncpa [#allocation6], 1
    %1053 = vsyncpa [#allocation4], 1
    %s1054 = scalar_lea.sflag [#allocation4], 1
    %1055 = vsyncpa %s1054, 1

</llo_original>
